<compile_context>
chip_gen: v6e
topology: v6e:2x2x1
jax: 0.10.0
libtpu: 0.0.40
codegen_flags: <defaults>
</compile_context>

<pallas_src>
import jax
import jax.numpy as jnp
from jax.experimental import pallas as pl
from jax.experimental.pallas import tpu as pltpu


def mlp_kernel(x_ref, w1_ref, b1_ref, w2_ref, b2_ref, o_ref, acc_ref):
    """Grid = (batch_tile i, hidden K-tile k). Accumulates over k."""
    k = pl.program_id(1)

    @pl.when(k == 0)
    def _init():
        acc_ref[...] = jnp.zeros_like(acc_ref)

    # First linear for this K-slice of the hidden dim: bf16 MXU, f32 accumulate.
    h = jnp.dot(x_ref[...], w1_ref[...], preferred_element_type=jnp.float32)
    # Bias + ReLU in f32 on the VPU (exact: ReLU is elementwise over hidden).
    h = jnp.maximum(h + b1_ref[...], 0.0)
    # Second linear partial product, accumulated over K-slices in f32.
    acc_ref[...] += jnp.dot(h.astype(w2_ref.dtype), w2_ref[...],
                            preferred_element_type=jnp.float32)

    @pl.when(k == pl.num_programs(1) - 1)
    def _finalize():
        o_ref[...] = (acc_ref[...] + b2_ref[...]).astype(o_ref.dtype)


def _pick_tile_k(H):
    for cand in (512, 256, 128):
        if H % cand == 0:
            return cand
    return H


def _vmem_limit_bytes(tile_b, dim, tile_k, E):
    bf16, f32 = 2, 4
    per_step = (
        2 * tile_b * dim * bf16        # x tile (double-buffered)
        + 2 * dim * tile_k * bf16      # W1 K-slice (double-buffered)
        + 2 * tile_k * E * bf16        # W2 K-slice (double-buffered)
        + 2 * (tile_k + E) * f32       # bias tiles
        + 2 * tile_b * E * f32         # output tile (double-buffered)
        + tile_b * E * f32             # f32 accumulator scratch
        + tile_b * tile_k * f32        # intermediate h
    )
    # 2x headroom, never below the 32 MiB default, capped well under HBM-sized.
    return int(min(max(2 * per_step, 32 * 1024 * 1024), 100 * 1024 * 1024))


def mlp_forward(x, w1, b1, w2, b2, *, tile_b=None, tile_k=None):
    """x: (B, dim); w1: (dim, H); b1: (1, H); w2: (H, E); b2: (1, E)."""
    B, dim = x.shape
    H, E = w2.shape
    assert w1.shape == (dim, H) and b1.shape == (1, H) and b2.shape == (1, E)
    out_dtype = x.dtype

    # Batch tile: fixed-size tiles so the grid has many steps (pipelining +
    # megacore sharding); 256 is a good default for v6e/v7x, use 128 on v5e.
    if tile_b is None:
        tile_b = min(256, ((B + 7) // 8) * 8)
    if tile_k is None:
        tile_k = _pick_tile_k(H)
    assert H % tile_k == 0

    # Ragged batch: pad with zero rows, slice the result back.
    B_pad = ((B + tile_b - 1) // tile_b) * tile_b
    if B_pad != B:
        x = jnp.pad(x, ((0, B_pad - B), (0, 0)))

    # bf16 operands for the MXU (f32 accumulation inside the kernel).
    x_bf16 = x.astype(jnp.bfloat16)
    w1 = w1.astype(jnp.bfloat16)
    w2 = w2.astype(jnp.bfloat16)
    b1 = b1.astype(jnp.float32)
    b2 = b2.astype(jnp.float32)

    grid = (B_pad // tile_b, H // tile_k)

    cost = pl.CostEstimate(
        flops=2 * B_pad * dim * H + 2 * B_pad * H * E,
        transcendentals=0,
        bytes_accessed=(x_bf16.size * 2 + w1.size * 2 + w2.size * 2
                        + b1.size * 4 + b2.size * 4 + B_pad * E * 4),
    )

    out = pl.pallas_call(
        mlp_kernel,
        out_shape=jax.ShapeDtypeStruct((B_pad, E), out_dtype),
        grid_spec=pltpu.PrefetchScalarGridSpec(
            num_scalar_prefetch=0,
            grid=grid,
            in_specs=[
                pl.BlockSpec((tile_b, dim), lambda i, k: (i, 0)),   # x tile
                pl.BlockSpec((dim, tile_k), lambda i, k: (0, k)),   # W1 K-slice
                pl.BlockSpec((1, tile_k), lambda i, k: (0, k)),     # b1 K-slice
                pl.BlockSpec((tile_k, E), lambda i, k: (k, 0)),     # W2 K-slice
                pl.BlockSpec((1, E), lambda i, k: (0, 0)),          # b2
            ],
            out_specs=pl.BlockSpec((tile_b, E), lambda i, k: (i, 0)),
            scratch_shapes=[pltpu.VMEM((tile_b, E), jnp.float32)],  # accumulator
        ),
        compiler_params=pltpu.CompilerParams(
            dimension_semantics=("parallel", "arbitrary"),
            vmem_limit_bytes=_vmem_limit_bytes(tile_b, dim, tile_k, E),
        ),
        cost_estimate=cost,
    )(x_bf16, w1, b1, w2, b2)

    if B_pad != B:
        out = out[:B]
    return out


def init_mlp_params(key, dim, embedding_size, hidden_size):
    """Deterministic synthetic params (shapes match the PyTorch module)."""
    k1, k2, k3, k4 = jax.random.split(key, 4)
    # PyTorch stores Linear weight as (out, in); we store the transpose (in, out).
    w1 = (jax.random.normal(k1, (dim, hidden_size), jnp.float32)
          / jnp.sqrt(dim)).astype(jnp.bfloat16)
    b1 = 0.01 * jax.random.normal(k2, (1, hidden_size), jnp.float32)
    w2 = (jax.random.normal(k3, (hidden_size, embedding_size), jnp.float32)
          / jnp.sqrt(hidden_size)).astype(jnp.bfloat16)
    b2 = 0.01 * jax.random.normal(k4, (1, embedding_size), jnp.float32)
    return w1, b1, w2, b2


if __name__ == "__main__":
    # Small but lane-aligned shapes (feature dims multiples of 128); ragged
    # batch (200) exercises the padding path; tile_b=128 / tile_k=128 gives a
    # 2x2 grid so both the batch pipelining and the K accumulator are used.
    batch, dim, hidden_size, embedding_size = 200, 128, 256, 128

    key = jax.random.PRNGKey(0)
    kx, kp = jax.random.split(key)
    x = jax.random.normal(kx, (batch, dim), jnp.float32)
    w1, b1, w2, b2 = init_mlp_params(kp, dim, embedding_size, hidden_size)

    out = mlp_forward(x, w1, b1, w2, b2, tile_b=128, tile_k=128)
    out = jax.block_until_ready(out)

    # Pure-JAX reference using the same bf16-operand / f32-accumulate math.
    xb = x.astype(jnp.bfloat16)
    h_ref = jnp.maximum(
        jnp.dot(xb, w1, preferred_element_type=jnp.float32) + b1, 0.0)
    ref = jnp.dot(h_ref.astype(jnp.bfloat16), w2,
                  preferred_element_type=jnp.float32) + b2

    assert out.shape == (batch, embedding_size)
    assert jnp.allclose(out.astype(jnp.float32), ref, atol=2e-2, rtol=2e-2)

    print("KERNEL_OK")
</pallas_src>

<mosaic_0001>
module attributes {stable_mosaic.version = 11 : i64} {
  func.func @mlp_kernel(%arg0: i32, %arg1: i32, %arg2: memref<128x128xbf16, #tpu.memory_space<vmem>>, %arg3: memref<128x128xbf16, #tpu.memory_space<vmem>>, %arg4: memref<1x128xf32, #tpu.memory_space<vmem>>, %arg5: memref<128x128xbf16, #tpu.memory_space<vmem>>, %arg6: memref<1x128xf32, #tpu.memory_space<vmem>>, %arg7: memref<128x128xf32, #tpu.memory_space<vmem>>, %arg8: memref<128x128xf32, #tpu.memory_space<vmem>>) attributes {dimension_semantics = [#tpu.dimension_semantics<parallel>, #tpu.dimension_semantics<arbitrary>], iteration_bounds = array<i64: 2, 2>, scalar_prefetch = 0 : i64, scratch_operands = 1 : i64, tpu.core_type = #tpu.core_type<tc>, window_params = [{transform_indices = @transform_0, window_bounds = array<i64: 128, 128>}, {transform_indices = @transform_1, window_bounds = array<i64: 128, 128>}, {transform_indices = @transform_2, window_bounds = array<i64: 1, 128>}, {transform_indices = @transform_3, window_bounds = array<i64: 128, 128>}, {pipeline_mode = #tpu.pipeline_mode<synchronous>, transform_indices = @transform_4, window_bounds = array<i64: 1, 128>}, {transform_indices = @transform_5, window_bounds = array<i64: 128, 128>}]} {
    %c0_i32 = arith.constant 0 : i32
    %0 = arith.cmpi eq, %arg1, %c0_i32 : i32
    %1 = arith.extui %0 : i1 to i32
    %c0_i32_0 = arith.constant 0 : i32
    %2 = arith.cmpi ne, %1, %c0_i32_0 : i32
    scf.if %2 {
      %cst_15 = arith.constant 0.000000e+00 : f32
      %20 = vector.broadcast %cst_15 : f32 to vector<128x128xf32>
      %c0_16 = arith.constant 0 : index
      %c0_17 = arith.constant 0 : index
      %21 = vector.load %arg8[%c0_16, %c0_17] : memref<128x128xf32, #tpu.memory_space<vmem>>, vector<128x128xf32>
      tpu.vector_store %arg8[%c0_16, %c0_17], %20 {strides = array<i32>} : memref<128x128xf32, #tpu.memory_space<vmem>>, vector<128x128xf32>,
    } else {
    }
    %c0 = arith.constant 0 : index
    %c0_1 = arith.constant 0 : index
    %3 = vector.load %arg2[%c0, %c0_1] : memref<128x128xbf16, #tpu.memory_space<vmem>>, vector<128x128xbf16>
    %c0_2 = arith.constant 0 : index
    %c0_3 = arith.constant 0 : index
    %4 = vector.load %arg3[%c0_2, %c0_3] : memref<128x128xbf16, #tpu.memory_space<vmem>>, vector<128x128xbf16>
    %cst = arith.constant dense<0.000000e+00> : vector<128x128xf32>
    %5 = tpu.matmul %3, %4, %cst {dimension_numbers = #tpu.dot_dimension_numbers<[1], [0], [0], [1], [0, 0, 1, 1], [], []>} : vector<128x128xbf16>, vector<128x128xbf16>, vector<128x128xf32> -> vector<128x128xf32>
    %c0_4 = arith.constant 0 : index
    %c0_5 = arith.constant 0 : index
    %6 = vector.load %arg4[%c0_4, %c0_5] : memref<1x128xf32, #tpu.memory_space<vmem>>, vector<1x128xf32>
    %7 = vector.broadcast %6 : vector<1x128xf32> to vector<128x128xf32>
    %8 = arith.addf %5, %7 : vector<128x128xf32>
    %cst_6 = arith.constant 0.000000e+00 : f32
    %9 = vector.broadcast %cst_6 : f32 to vector<128x128xf32>
    %10 = arith.maximumf %8, %9 : vector<128x128xf32>
    %c0_7 = arith.constant 0 : index
    %c0_8 = arith.constant 0 : index
    %11 = vector.load %arg8[%c0_7, %c0_8] : memref<128x128xf32, #tpu.memory_space<vmem>>, vector<128x128xf32>
    %12 = arith.truncf %10 : vector<128x128xf32> to vector<128x128xbf16>
    %c0_9 = arith.constant 0 : index
    %c0_10 = arith.constant 0 : index
    %13 = vector.load %arg5[%c0_9, %c0_10] : memref<128x128xbf16, #tpu.memory_space<vmem>>, vector<128x128xbf16>
    %cst_11 = arith.constant dense<0.000000e+00> : vector<128x128xf32>
    %14 = tpu.matmul %12, %13, %cst_11 {dimension_numbers = #tpu.dot_dimension_numbers<[1], [0], [0], [1], [0, 0, 1, 1], [], []>} : vector<128x128xbf16>, vector<128x128xbf16>, vector<128x128xf32> -> vector<128x128xf32>
    %15 = arith.addf %11, %14 : vector<128x128xf32>
    %c0_12 = arith.constant 0 : index
    %c0_13 = arith.constant 0 : index
    %16 = vector.load %arg8[%c0_12, %c0_13] : memref<128x128xf32, #tpu.memory_space<vmem>>, vector<128x128xf32>
    tpu.vector_store %arg8[%c0_12, %c0_13], %15 {strides = array<i32>} : memref<128x128xf32, #tpu.memory_space<vmem>>, vector<128x128xf32>,
    %c1_i32 = arith.constant 1 : i32
    %17 = arith.cmpi eq, %arg1, %c1_i32 : i32
    %18 = arith.extui %17 : i1 to i32
    %c0_i32_14 = arith.constant 0 : i32
    %19 = arith.cmpi ne, %18, %c0_i32_14 : i32
    scf.if %19 {
      %c0_15 = arith.constant 0 : index
      %c0_16 = arith.constant 0 : index
      %20 = vector.load %arg8[%c0_15, %c0_16] : memref<128x128xf32, #tpu.memory_space<vmem>>, vector<128x128xf32>
      %c0_17 = arith.constant 0 : index
      %c0_18 = arith.constant 0 : index
      %21 = vector.load %arg6[%c0_17, %c0_18] : memref<1x128xf32, #tpu.memory_space<vmem>>, vector<1x128xf32>
      %22 = vector.broadcast %21 : vector<1x128xf32> to vector<128x128xf32>
      %23 = arith.addf %20, %22 : vector<128x128xf32>
      %c0_19 = arith.constant 0 : index
      %c0_20 = arith.constant 0 : index
      %24 = vector.load %arg7[%c0_19, %c0_20] : memref<128x128xf32, #tpu.memory_space<vmem>>, vector<128x128xf32>
      tpu.vector_store %arg7[%c0_19, %c0_20], %23 {strides = array<i32>} : memref<128x128xf32, #tpu.memory_space<vmem>>, vector<128x128xf32>,
    } else {
    }
    return
  }
  func.func @transform_0(%arg0: i32, %arg1: i32) -> (i32, i32) {
    %c0_i32 = arith.constant 0 : i32
    %c0_i32_0 = arith.constant 0 : i32
    return %arg0, %c0_i32 : i32, i32
  }
  func.func @transform_1(%arg0: i32, %arg1: i32) -> (i32, i32) {
    %c0_i32 = arith.constant 0 : i32
    %c0_i32_0 = arith.constant 0 : i32
    return %c0_i32, %arg1 : i32, i32
  }
  func.func @transform_2(%arg0: i32, %arg1: i32) -> (i32, i32) {
    %c0_i32 = arith.constant 0 : i32
    %c0_i32_0 = arith.constant 0 : i32
    return %c0_i32, %arg1 : i32, i32
  }
  func.func @transform_3(%arg0: i32, %arg1: i32) -> (i32, i32) {
    %c0_i32 = arith.constant 0 : i32
    %c0_i32_0 = arith.constant 0 : i32
    return %arg1, %c0_i32 : i32, i32
  }
  func.func @transform_4(%arg0: i32, %arg1: i32) -> (i32, i32) {
    %c0_i32 = arith.constant 0 : i32
    %c0_i32_0 = arith.constant 0 : i32
    %c0_i32_1 = arith.constant 0 : i32
    return %c0_i32, %c0_i32_0 : i32, i32
  }
  func.func @transform_5(%arg0: i32, %arg1: i32) -> (i32, i32) {
    %c0_i32 = arith.constant 0 : i32
    %c0_i32_0 = arith.constant 0 : i32
    return %arg0, %c0_i32 : i32, i32
  }
}

</mosaic_0001>

<llo_original>
// kernel: tpu_custom_call.1
$region0: #{tpu_custom_call.1}
  #allocation0 [shape = 'u32[]', space=smem, size = 0x4, offset = 0x4, fixed_abs, tag = 'smem constant byte address 0x4 - core index']
  #allocation1 [shape = 'u32[144,128]{1,0:T(1,128)}', space=vmem, size = 0x12000, scoped, tag = 'internal scratch']
  #allocation2 [shape = 'f32[128,128]{1,0:T(8,128)}', space=vmem, size = 0x10000, scoped, tag = 'scratch operand']
  %s0 = inlined_call_operand.hbm [shape: bf16[256,128], index: 0, kind: input, shape index: {}]
  %s1 = inlined_call_operand.hbm [shape: bf16[128,256], index: 1, kind: input, shape index: {}]
  %s2 = inlined_call_operand.vmem [shape: f32[1,256], index: 2, kind: input, shape index: {}]
  %s3 = inlined_call_operand.hbm [shape: bf16[256,128], index: 3, kind: input, shape index: {}]
  %s4 = inlined_call_operand.vmem [shape: f32[1,128], index: 4, kind: input, shape index: {}]
  %s5 = inlined_call_operand.hbm [shape: f32[256,128], index: 5, kind: output, shape index: {}]
  %s6 = sld [smem:[#allocation0]]
  $region73: #{tpu_custom_call.1} parent=0
    _
  %s8 = ssub.s32 1, %s6
  %s9 = scalar_select 0, %s8, %s6
  $region1: #{tpu_custom_call.1} parent=0
    #allocation3 [shape = 'u8[65536]{0}', space=vmem, size = 0x10000, scoped, tag = 'input window, operand 0']
    #allocation4 [shape = 's32[2]{0}', space=sflag, size = 0x8, scoped, tag = 'scoped memory for tpu_custom_call.1']
    #allocation5 [shape = 's32[2]{0}', space=sflag, size = 0x8, scoped, tag = 'scoped memory for tpu_custom_call.1']
    #allocation6 [shape = 'u8[65536]{0}', space=vmem, size = 0x10000, scoped, tag = 'input window, operand 1']
    #allocation7 [shape = 's32[2]{0}', space=sflag, size = 0x8, scoped, tag = 'scoped memory for tpu_custom_call.1']
    #allocation8 [shape = 'u8[65536]{0}', space=vmem, size = 0x10000, scoped, tag = 'input window, operand 3']
    #allocation9 [shape = 'u8[131072]{0}', space=vmem, size = 0x20000, scoped, tag = 'output window, operand 0']
    %10 = vsyncpa [#allocation4], 0
    %s11 = scalar_lea.sflag [#allocation4], 1
    %12 = vsyncpa %s11, 0
    %13 = vsyncpa [#allocation7], 0
    %s14 = scalar_lea.sflag [#allocation7], 1
    %15 = vsyncpa %s14, 0
    %16 = vsyncpa [#allocation5], 0
    %s17 = scalar_lea.sflag [#allocation5], 1
    %18 = vsyncpa %s17, 0
    loop: start=0, step=1, limit=6
    $region2: #{tpu_custom_call.1} parent=1 // loop_pre_header
      _
    $region3: #{tpu_custom_call.1} parent=1 // loop_header
      %s20 = sphi 0, %s24
      %p21 = scmp.ge.s32.totalorder %s20, 6
      %s27 = sphi 0, %s39
      %s28 = sphi 0, %s35
      %s29 = sphi 0, %s27
      %s30 = sphi 0, %s28
      %s31 = sphi 0, %s29
      %s32 = sphi 0, %s30
      %s42 = sphi 0, %s44
      %s45 = sphi 0, %s42
      %s46 = sphi 0, %s45
      %s62 = sphi 0, %s46
      %s68 = sphi 0, %s70
      %s71 = sphi 0, %s68
      %s72 = sphi 0, %s71
      %s88 = sphi 0, %s72
      %s94 = sphi 0, %s96
      %s97 = sphi 0, %s94
      %s98 = sphi 0, %s97
      %s114 = sphi 0, %s98
      %s120 = sphi 0, %s122
      %s123 = sphi 0, %s120
      %s124 = sphi 0, %s123
      %s140 = sphi 0, %s124
      %s144 = sphi 0, %s144
      %s146 = sphi 0, %s144
      %s147 = sphi 0, %s146
      %s161 = sphi 0, %s147
      %s167 = sphi 0, %s169
      %s170 = sphi 0, %s167
      %s171 = sphi 0, %s170
      %s187 = sphi 0, %s171
    $region4: #{tpu_custom_call.1} parent=1 // loop_header_branch
      %23 = sbr.rel (%p21) target = $region8
    $region5: #{tpu_custom_call.1} parent=1 // loop_body
      %s25 = ssub.s32 %s20, 1
      %s26 = ssub.s32 %s20, 2
      %s33 = sadd.s32 1, %s28
      %p34 = scmp.ge.s32.totalorder %s33, 2
      %s35 = scalar_select %p34, 0, %s33
      %s36 = sadd.s32 1, %s27
      %s37 = scalar_select %p34, %s36, %s27
      %p38 = scmp.ge.s32.totalorder %s37, 2
      %s39 = scalar_select %p38, 0, %s37
      %s40 = ssub.s32 %s27, %s39
      %p41 = scmp.eq.s32.totalorder %s40, 0
      %s43 = sadd.s32 %s42, 1
      %s44 = scalar_select %p41, %s42, %s43
      %p47 = pneg %p41
      %p48 = scmp.eq.s32.totalorder %s20, 3
      %p49 = por %p47, %p48
      %p50 = scmp.ne.s32.totalorder %s42, %s45
      %p51 = scmp.eq.s32.totalorder %s20, 0
      %p52 = por %p50, %p51
      %p53 = scmp.ne.s32.totalorder %s42, %s45
      %p54 = scmp.eq.s32.totalorder %s25, 3
      %p55 = por %p53, %p54
      %p56 = scmp.ne.s32.totalorder %s45, %s46
      %p57 = scmp.eq.s32.totalorder %s25, 0
      %p58 = por %p56, %p57
      %p59 = scmp.ne.s32.totalorder %s45, %s46
      %p60 = scmp.eq.s32.totalorder %s26, 3
      %p61 = por %p59, %p60
      %p63 = scmp.ne.s32.totalorder %s46, %s62
      %p64 = scmp.eq.s32.totalorder %s26, 0
      %p65 = por %p63, %p64
      %s66 = ssub.s32 %s28, %s35
      %p67 = scmp.eq.s32.totalorder %s66, 0
      %s69 = sadd.s32 %s68, 1
      %s70 = scalar_select %p67, %s68, %s69
      %p73 = pneg %p67
      %p74 = scmp.eq.s32.totalorder %s20, 3
      %p75 = por %p73, %p74
      %p76 = scmp.ne.s32.totalorder %s68, %s71
      %p77 = scmp.eq.s32.totalorder %s20, 0
      %p78 = por %p76, %p77
      %p79 = scmp.ne.s32.totalorder %s68, %s71
      %p80 = scmp.eq.s32.totalorder %s25, 3
      %p81 = por %p79, %p80
      %p82 = scmp.ne.s32.totalorder %s71, %s72
      %p83 = scmp.eq.s32.totalorder %s25, 0
      %p84 = por %p82, %p83
      %p85 = scmp.ne.s32.totalorder %s71, %s72
      %p86 = scmp.eq.s32.totalorder %s26, 3
      %p87 = por %p85, %p86
      %p89 = scmp.ne.s32.totalorder %s72, %s88
      %p90 = scmp.eq.s32.totalorder %s26, 0
      %p91 = por %p89, %p90
      %s92 = ssub.s32 %s28, %s35
      %p93 = scmp.eq.s32.totalorder %s92, 0
      %s95 = sadd.s32 %s94, 1
      %s96 = scalar_select %p93, %s94, %s95
      %p99 = pneg %p93
      %p100 = scmp.eq.s32.totalorder %s20, 3
      %p101 = por %p99, %p100
      %p102 = scmp.ne.s32.totalorder %s94, %s97
      %p103 = scmp.eq.s32.totalorder %s20, 0
      %p104 = por %p102, %p103
      %p105 = scmp.ne.s32.totalorder %s94, %s97
      %p106 = scmp.eq.s32.totalorder %s25, 3
      %p107 = por %p105, %p106
      %p108 = scmp.ne.s32.totalorder %s97, %s98
      %p109 = scmp.eq.s32.totalorder %s25, 0
      %p110 = por %p108, %p109
      %p111 = scmp.ne.s32.totalorder %s97, %s98
      %p112 = scmp.eq.s32.totalorder %s26, 3
      %p113 = por %p111, %p112
      %p115 = scmp.ne.s32.totalorder %s98, %s114
      %p116 = scmp.eq.s32.totalorder %s26, 0
      %p117 = por %p115, %p116
      %s118 = ssub.s32 %s28, %s35
      %p119 = scmp.eq.s32.totalorder %s118, 0
      %s121 = sadd.s32 %s120, 1
      %s122 = scalar_select %p119, %s120, %s121
      %p125 = pneg %p119
      %p126 = scmp.eq.s32.totalorder %s20, 3
      %p127 = por %p125, %p126
      %p128 = scmp.ne.s32.totalorder %s120, %s123
      %p129 = scmp.eq.s32.totalorder %s20, 0
      %p130 = por %p128, %p129
      %p131 = scmp.ne.s32.totalorder %s120, %s123
      %p132 = scmp.eq.s32.totalorder %s25, 3
      %p133 = por %p131, %p132
      %p134 = scmp.ne.s32.totalorder %s123, %s124
      %p135 = scmp.eq.s32.totalorder %s25, 0
      %p136 = por %p134, %p135
      %p137 = scmp.ne.s32.totalorder %s123, %s124
      %p138 = scmp.eq.s32.totalorder %s26, 3
      %p139 = por %p137, %p138
      %p141 = scmp.ne.s32.totalorder %s124, %s140
      %p142 = scmp.eq.s32.totalorder %s26, 0
      %p143 = por %p141, %p142
      %s145 = sadd.s32 %s144, 1
      %p148 = scmp.eq.s32.totalorder %s20, 3
      %p149 = scmp.ne.s32.totalorder %s144, %s146
      %p150 = scmp.eq.s32.totalorder %s20, 0
      %p151 = por %p149, %p150
      %p152 = scmp.ne.s32.totalorder %s144, %s146
      %p153 = scmp.eq.s32.totalorder %s25, 3
      %p154 = por %p152, %p153
      %p155 = scmp.ne.s32.totalorder %s146, %s147
      %p156 = scmp.eq.s32.totalorder %s25, 0
      %p157 = por %p155, %p156
      %p158 = scmp.ne.s32.totalorder %s146, %s147
      %p159 = scmp.eq.s32.totalorder %s26, 3
      %p160 = por %p158, %p159
      %p162 = scmp.ne.s32.totalorder %s147, %s161
      %p163 = scmp.eq.s32.totalorder %s26, 0
      %p164 = por %p162, %p163
      %s165 = ssub.s32 %s27, %s39
      %p166 = scmp.eq.s32.totalorder %s165, 0
      %s168 = sadd.s32 %s167, 1
      %s169 = scalar_select %p166, %s167, %s168
      %p172 = pneg %p166
      %p173 = scmp.eq.s32.totalorder %s20, 3
      %p174 = por %p172, %p173
      %p175 = scmp.ne.s32.totalorder %s167, %s170
      %p176 = scmp.eq.s32.totalorder %s20, 0
      %p177 = por %p175, %p176
      %p178 = scmp.ne.s32.totalorder %s167, %s170
      %p179 = scmp.eq.s32.totalorder %s25, 3
      %p180 = por %p178, %p179
      %p181 = scmp.ne.s32.totalorder %s170, %s171
      %p182 = scmp.eq.s32.totalorder %s25, 0
      %p183 = por %p181, %p182
      %p184 = scmp.ne.s32.totalorder %s170, %s171
      %p185 = scmp.eq.s32.totalorder %s26, 3
      %p186 = por %p184, %p185
      %p188 = scmp.ne.s32.totalorder %s171, %s187
      %p189 = scmp.eq.s32.totalorder %s26, 0
      %p190 = por %p188, %p189
      %p191 = scmp.le.s32.totalorder 1, %s20
      %p192 = scmp.lt.s32.totalorder %s20, 5
      %p193 = pnand %p191, %p192
      %p194 = pneg %p193
      // Predicated region
      $region9: #{tpu_custom_call.1} parent=5 // pred_check
        _
      $region10: #{tpu_custom_call.1} parent=5 // pred_check_branch
        %196 = sbr.rel (%p193) target = $region12
      $region11: #{tpu_custom_call.1} parent=5 // pred_region
        %s197 = ssub.s32 %s20, 1
        // Predicated region
        $region13: #{tpu_custom_call.1} parent=11 // pred_check
          %p198 = pneg %p157
        $region14: #{tpu_custom_call.1} parent=11 // pred_check_branch
          %200 = sbr.rel (%p198) target = $region16
        $region15: #{tpu_custom_call.1} parent=11 // pred_region
          _
        $region16: #{tpu_custom_call.1} parent=11 // pred_fallthru
          _
      $region12: #{tpu_custom_call.1} parent=5 // pred_fallthru
        _
      %p201 = scmp.lt.s32.totalorder %s20, 4
      // Predicated region
      $region17: #{tpu_custom_call.1} parent=5 // pred_check
        %p202 = pneg %p201
      $region18: #{tpu_custom_call.1} parent=5 // pred_check_branch
        %204 = sbr.rel (%p202) target = $region20
      $region19: #{tpu_custom_call.1} parent=5 // pred_region
        // Predicated region
        $region21: #{tpu_custom_call.1} parent=19 // pred_check
          %p205 = pneg %p52
        $region22: #{tpu_custom_call.1} parent=19 // pred_check_branch
          %207 = sbr.rel (%p205) target = $region24
        $region23: #{tpu_custom_call.1} parent=19 // pred_region
          %s208 = sand.u32 %s42, 1
          %s209 = scalar_lea.sflag [#allocation4], %s208
          %s210 = sand.u32 %s42, 1
          %s211 = smul.addr %s210, 64
          %s212 = scalar_lea.vmem [#allocation3], %s211
          %s213 = smul.u32 16, %s27
          %s215 = ssub.s32 1024, 1024
          %216 = vsyncadd %s209, %s215
          %s217 = smul.addr %s213, 64
          %s218 = scalar_lea.hbm %s0, %s217
          %s219 = sshll.u32 %s212, 4
          %s220 = int_to_ptr.vmem [resolvable:$true] %s219
          %225 = dma.hbm_to_vmem [thread:$0]  %s218, 1024, %s220, %s209, 64, 64, 4
        $region24: #{tpu_custom_call.1} parent=19 // pred_fallthru
          _
        // Predicated region
        $region25: #{tpu_custom_call.1} parent=19 // pred_check
          %p226 = pneg %p78
        $region26: #{tpu_custom_call.1} parent=19 // pred_check_branch
          %228 = sbr.rel (%p226) target = $region28
        $region27: #{tpu_custom_call.1} parent=19 // pred_region
          %s229 = sand.u32 %s20, 1
          %s230 = scalar_lea.sflag [#allocation7], %s229
          %s231 = sand.u32 %s68, 1
          %s232 = smul.addr %s231, 64
          %s233 = scalar_lea.vmem [#allocation6], %s232
          %s235 = ssub.s32 1024, 1024
          %236 = vsyncadd %s230, %s235
          %s237 = smul.addr %s28, 64
          %s238 = scalar_lea.hbm %s1, %s237
          %s239 = sshll.u32 %s233, 4
          %s240 = int_to_ptr.vmem [resolvable:$true] %s239
          %245 = dma.hbm_to_vmem [thread:$0]  %s238, 1024, %s240, %s230, 128, 64, 4
        $region28: #{tpu_custom_call.1} parent=19 // pred_fallthru
          _
        // Predicated region
        $region29: #{tpu_custom_call.1} parent=19 // pred_check
          %p246 = pneg %p104
        $region30: #{tpu_custom_call.1} parent=19 // pred_check_branch
          %248 = sbr.rel (%p246) target = $region32
        $region31: #{tpu_custom_call.1} parent=19 // pred_region
          %p249 = scmp.lt.s32.totalorder %s28, 1
          %s250 = scalar_select %p249, %s28, 1
          %s251 = scalar_lea.vmem %s2, %s250
        $region32: #{tpu_custom_call.1} parent=19 // pred_fallthru
          _
        // Predicated region
        $region33: #{tpu_custom_call.1} parent=19 // pred_check
          %p252 = pneg %p130
        $region34: #{tpu_custom_call.1} parent=19 // pred_check_branch
          %254 = sbr.rel (%p252) target = $region36
        $region35: #{tpu_custom_call.1} parent=19 // pred_region
          %s255 = sand.u32 %s20, 1
          %s256 = scalar_lea.sflag [#allocation7], %s255
          %s257 = sand.u32 %s120, 1
          %s258 = smul.addr %s257, 64
          %s259 = scalar_lea.vmem [#allocation8], %s258
          %s260 = smul.u32 16, %s28
          %s262 = ssub.s32 1024, 1024
          %263 = vsyncadd %s256, %s262
          %s264 = smul.addr %s260, 64
          %s265 = scalar_lea.hbm %s3, %s264
          %s266 = sshll.u32 %s259, 4
          %s267 = int_to_ptr.vmem [resolvable:$true] %s266
          %272 = dma.hbm_to_vmem [thread:$0]  %s265, 1024, %s267, %s256, 64, 64, 4
        $region36: #{tpu_custom_call.1} parent=19 // pred_fallthru
          _
      $region20: #{tpu_custom_call.1} parent=5 // pred_fallthru
        _
      %p273 = scmp.le.s32.totalorder 1, %s20
      %p274 = scmp.lt.s32.totalorder %s20, 5
      %p275 = pnand %p273, %p274
      %p276 = pneg %p275
      // Predicated region
      $region37: #{tpu_custom_call.1} parent=5 // pred_check
        _
      $region38: #{tpu_custom_call.1} parent=5 // pred_check_branch
        %278 = sbr.rel (%p275) target = $region40
      $region39: #{tpu_custom_call.1} parent=5 // pred_region
        %s279 = ssub.s32 %s20, 1
        %s280 = sand.u32 %s45, 1
        %s281 = scalar_lea.sflag [#allocation4], %s280
        %s282 = sand.u32 %s45, 1
        %s283 = smul.addr %s282, 64
        %s284 = scalar_lea.vmem [#allocation3], %s283
        // Predicated region
        $region41: #{tpu_custom_call.1} parent=39 // pred_check
          %p285 = pneg %p58
        $region42: #{tpu_custom_call.1} parent=39 // pred_check_branch
          %287 = sbr.rel (%p285) target = $region44
        $region43: #{tpu_custom_call.1} parent=39 // pred_region
          %288 = dma.done %s281, 1024
        $region44: #{tpu_custom_call.1} parent=39 // pred_fallthru
          _
        %s289 = sand.u32 %s25, 1
        %s290 = scalar_lea.sflag [#allocation7], %s289
        %s291 = sand.u32 %s71, 1
        %s292 = smul.addr %s291, 64
        %s293 = scalar_lea.vmem [#allocation6], %s292
        // Predicated region
        $region45: #{tpu_custom_call.1} parent=39 // pred_check
          %p294 = pneg %p84
        $region46: #{tpu_custom_call.1} parent=39 // pred_check_branch
          %296 = sbr.rel (%p294) target = $region48
        $region47: #{tpu_custom_call.1} parent=39 // pred_region
          %297 = dma.done %s290, 1024
        $region48: #{tpu_custom_call.1} parent=39 // pred_fallthru
          _
        %s298 = sand.u32 %s25, 1
        %s299 = scalar_lea.sflag [#allocation7], %s298
        %s300 = sand.u32 %s123, 1
        %s301 = smul.addr %s300, 64
        %s302 = scalar_lea.vmem [#allocation8], %s301
        // Predicated region
        $region49: #{tpu_custom_call.1} parent=39 // pred_check
          %p303 = pneg %p136
        $region50: #{tpu_custom_call.1} parent=39 // pred_check_branch
          %305 = sbr.rel (%p303) target = $region52
        $region51: #{tpu_custom_call.1} parent=39 // pred_region
          %306 = dma.done %s299, 1024
        $region52: #{tpu_custom_call.1} parent=39 // pred_fallthru
          _
        %s307 = sand.u32 %s45, 1
        %s308 = scalar_lea.sflag [#allocation4], %s307
        %s309 = sand.u32 %s45, 1
        %s310 = smul.addr %s309, 64
        %s311 = scalar_lea.vmem [#allocation3], %s310
        %p312 = pneg %p58
        %p313 = pneg %p55
        %s314 = sand.u32 %s25, 1
        %s315 = scalar_lea.sflag [#allocation7], %s314
        %s316 = sand.u32 %s71, 1
        %s317 = smul.addr %s316, 64
        %s318 = scalar_lea.vmem [#allocation6], %s317
        %p319 = pneg %p84
        %p320 = pneg %p81
        %p321 = scmp.lt.s32.totalorder %s30, 1
        %s322 = scalar_select %p321, %s30, 1
        %s323 = scalar_lea.vmem %s2, %s322
        %p324 = pneg %p110
        %p325 = pneg %p107
        %s326 = sand.u32 %s25, 1
        %s327 = scalar_lea.sflag [#allocation7], %s326
        %s328 = sand.u32 %s123, 1
        %s329 = smul.addr %s328, 64
        %s330 = scalar_lea.vmem [#allocation8], %s329
        %p331 = pneg %p136
        %p332 = pneg %p133
        %p333 = pneg %p157
        %p334 = pneg %p154
        %p335 = pneg %p183
        %p336 = pneg %p180
        %s337 = sand.u32 %s170, 1
        %s338 = scalar_lea.sflag [#allocation5], %s337
        %s339 = sand.u32 %s170, 1
        %s340 = smul.addr %s339, 128
        %s341 = scalar_lea.vmem [#allocation9], %s340
        %s342 = smul.u32 16, %s29
        %p343 = scmp.lt.s32.totalorder %s30, 1
        %s344 = scalar_select %p343, %s30, 1
        %s345 = scalar_lea.vmem %s2, %s344
        %s346 = smul.u32 16, %s30
        %s347 = smul.u32 16, %s29
        %p349 = scmp.eq.s32.totalorder %s30, 0
        // Predicated region
        $region53: #{tpu_custom_call.1} parent=39 // pred_check
          %p350 = pneg %p349
        $region54: #{tpu_custom_call.1} parent=39 // pred_check_branch
          %352 = sbr.rel (%p350) target = $region56
        $region55: #{tpu_custom_call.1} parent=39 // pred_region
          %353 = vst [vmem:[#allocation2] sm:$0xff] 0.0
          %354 = vst [vmem:[#allocation2 + $0x8] sm:$0xff] 0.0
          %355 = vst [vmem:[#allocation2 + $0x10] sm:$0xff] 0.0
          %356 = vst [vmem:[#allocation2 + $0x18] sm:$0xff] 0.0
          %357 = vst [vmem:[#allocation2 + $0x20] sm:$0xff] 0.0
          %358 = vst [vmem:[#allocation2 + $0x28] sm:$0xff] 0.0
          %359 = vst [vmem:[#allocation2 + $0x30] sm:$0xff] 0.0
          %360 = vst [vmem:[#allocation2 + $0x38] sm:$0xff] 0.0
          %361 = vst [vmem:[#allocation2 + $0x40] sm:$0xff] 0.0
          %362 = vst [vmem:[#allocation2 + $0x48] sm:$0xff] 0.0
          %363 = vst [vmem:[#allocation2 + $0x50] sm:$0xff] 0.0
          %364 = vst [vmem:[#allocation2 + $0x58] sm:$0xff] 0.0
          %365 = vst [vmem:[#allocation2 + $0x60] sm:$0xff] 0.0
          %366 = vst [vmem:[#allocation2 + $0x68] sm:$0xff] 0.0
          %367 = vst [vmem:[#allocation2 + $0x70] sm:$0xff] 0.0
          %368 = vst [vmem:[#allocation2 + $0x78] sm:$0xff] 0.0
        $region56: #{tpu_custom_call.1} parent=39 // pred_fallthru
          _
        %v369 = vld [vmem:[%s284] sm:$0xf]
        %v370 = vld [vmem:[%s284 + $0x4] sm:$0xf]
        %v371 = vld [vmem:[%s284 + $0x8] sm:$0xf]
        %v372 = vld [vmem:[%s284 + $0xc] sm:$0xf]
        %v373 = vld [vmem:[%s284 + $0x10] sm:$0xf]
        %v374 = vld [vmem:[%s284 + $0x14] sm:$0xf]
        %v375 = vld [vmem:[%s284 + $0x18] sm:$0xf]
        %v376 = vld [vmem:[%s284 + $0x1c] sm:$0xf]
        %v377 = vld [vmem:[%s284 + $0x20] sm:$0xf]
        %v378 = vld [vmem:[%s284 + $0x24] sm:$0xf]
        %v379 = vld [vmem:[%s284 + $0x28] sm:$0xf]
        %v380 = vld [vmem:[%s284 + $0x2c] sm:$0xf]
        %v381 = vld [vmem:[%s284 + $0x30] sm:$0xf]
        %v382 = vld [vmem:[%s284 + $0x34] sm:$0xf]
        %v383 = vld [vmem:[%s284 + $0x38] sm:$0xf]
        %v384 = vld [vmem:[%s284 + $0x3c] sm:$0xf]
        %v385 = vld [vmem:[%s293] sm:$0xf]
        %v386 = vld [vmem:[%s293 + $0x4] sm:$0xf]
        %v387 = vld [vmem:[%s293 + $0x8] sm:$0xf]
        %v388 = vld [vmem:[%s293 + $0xc] sm:$0xf]
        %v389 = vld [vmem:[%s293 + $0x10] sm:$0xf]
        %v390 = vld [vmem:[%s293 + $0x14] sm:$0xf]
        %v391 = vld [vmem:[%s293 + $0x18] sm:$0xf]
        %v392 = vld [vmem:[%s293 + $0x1c] sm:$0xf]
        %v393 = vld [vmem:[%s293 + $0x20] sm:$0xf]
        %v394 = vld [vmem:[%s293 + $0x24] sm:$0xf]
        %v395 = vld [vmem:[%s293 + $0x28] sm:$0xf]
        %v396 = vld [vmem:[%s293 + $0x2c] sm:$0xf]
        %v397 = vld [vmem:[%s293 + $0x30] sm:$0xf]
        %v398 = vld [vmem:[%s293 + $0x34] sm:$0xf]
        %v399 = vld [vmem:[%s293 + $0x38] sm:$0xf]
        %v400 = vld [vmem:[%s293 + $0x3c] sm:$0xf]
        %v401 = vld [vmem:[%s345] sm:$0x1]
        %v403 = vlaneseq
        %v404 = vshrl.u32 %v403, 7
        %v405 = vsub.s32 0, %v404
        %v406 = vrot.slane %v401, %v405
        %v424 = vunpack.c.l.b16 %v369
        %v425 = vunpack.c.l.b16 %v370
        %v426 = vunpack.c.l.b16 %v371
        %v427 = vunpack.c.l.b16 %v372
        %v428 = vunpack.c.l.b16 %v373
        %v429 = vunpack.c.l.b16 %v374
        %v430 = vunpack.c.l.b16 %v375
        %v431 = vunpack.c.l.b16 %v376
        %v432 = vunpack.c.l.b16 %v377
        %v433 = vunpack.c.l.b16 %v378
        %v434 = vunpack.c.l.b16 %v379
        %v435 = vunpack.c.l.b16 %v380
        %v436 = vunpack.c.l.b16 %v381
        %v437 = vunpack.c.l.b16 %v382
        %v438 = vunpack.c.l.b16 %v383
        %v439 = vunpack.c.l.b16 %v384
        %v440 = vpack.c.b16 %v425, %v424
        %v441 = vpack.c.b16 %v427, %v426
        %v442 = vpack.c.b16 %v429, %v428
        %v443 = vpack.c.b16 %v431, %v430
        %v444 = vpack.c.b16 %v433, %v432
        %v445 = vpack.c.b16 %v435, %v434
        %v446 = vpack.c.b16 %v437, %v436
        %v447 = vpack.c.b16 %v439, %v438
        %v472 = vunpack.c.l.b16 %v385
        %v473 = vunpack.c.l.b16 %v386
        %v474 = vunpack.c.l.b16 %v387
        %v475 = vunpack.c.l.b16 %v388
        %v476 = vunpack.c.l.b16 %v389
        %v477 = vunpack.c.l.b16 %v390
        %v478 = vunpack.c.l.b16 %v391
        %v479 = vunpack.c.l.b16 %v392
        %v480 = vunpack.c.l.b16 %v393
        %v481 = vunpack.c.l.b16 %v394
        %v482 = vunpack.c.l.b16 %v395
        %v483 = vunpack.c.l.b16 %v396
        %v484 = vunpack.c.l.b16 %v397
        %v485 = vunpack.c.l.b16 %v398
        %v486 = vunpack.c.l.b16 %v399
        %v487 = vunpack.c.l.b16 %v400
        %v488 = vpack.c.b16 %v473, %v472
        %v489 = vpack.c.b16 %v475, %v474
        %v490 = vpack.c.b16 %v477, %v476
        %v491 = vpack.c.b16 %v479, %v478
        %v492 = vpack.c.b16 %v481, %v480
        %v493 = vpack.c.b16 %v483, %v482
        %v494 = vpack.c.b16 %v485, %v484
        %v495 = vpack.c.b16 %v487, %v486
        %504 = vmatprep.subr.bf16.mxu0 0
        %505 = vmatpush1.bf16.msra.mxu0 %v495
        %506 = vmatprep.subr.bf16.mxu0 0
        %507 = vmatpush1.bf16.msra.mxu0 %v494
        %508 = vmatprep.subr.bf16.mxu0 0
        %509 = vmatpush1.bf16.msra.mxu0 %v493
        %510 = vmatprep.subr.bf16.mxu0 0
        %511 = vmatpush1.bf16.msra.mxu0 %v492
        %512 = vmatprep.subr.bf16.mxu0 0
        %513 = vmatpush1.bf16.msra.mxu0 %v491
        %514 = vmatprep.subr.bf16.mxu0 0
        %515 = vmatpush1.bf16.msra.mxu0 %v490
        %516 = vmatprep.subr.bf16.mxu0 0
        %517 = vmatpush1.bf16.msra.mxu0 %v489
        %518 = vmatprep.subr.bf16.mxu0 0
        %519 = vmatpush1.bf16.msra.mxu0 %v488
        %520 = vmatprep.subr.bf16.mxu0 0
        %521 = vmatpush2.bf16.msra.mxu0 0
        %522 = vmatprep.subr.bf16.mxu0 0
        %523 = vmatpush2.bf16.msra.mxu0 0
        %524 = vmatprep.subr.bf16.mxu0 0
        %525 = vmatpush2.bf16.msra.mxu0 0
        %526 = vmatprep.subr.bf16.mxu0 0
        %527 = vmatpush2.bf16.msra.mxu0 0
        %528 = vmatprep.subr.bf16.mxu0 0
        %529 = vmatpush2.bf16.msra.mxu0 0
        %530 = vmatprep.subr.bf16.mxu0 0
        %531 = vmatpush2.bf16.msra.mxu0 0
        %532 = vmatprep.subr.bf16.mxu0 0
        %533 = vmatpush2.bf16.msra.mxu0 0
        %534 = vmatprep.subr.bf16.mxu0 0
        %535 = vmatpush2.bf16.msra.mxu0 0
        %536 = vmatprep.mubr.bf16.mxu0 0
        %537 = vmatmul.mubr.bf16.gmra.mxu0 %v440
        %v538 = vpop.f32.mrf.mxu0
        %v539 = vadd.f32 %v406, %v538
        %v540 = vpop.f32.mrf.mxu0
        %v541 = vpop.f32.mrf.mxu0
        %v542 = vadd.f32 %v406, %v541
        %v543 = vpop.f32.mrf.mxu0
        %544 = vmatprep.mubr.bf16.mxu0 0
        %545 = vmatmul.mubr.bf16.gmra.mxu0 %v441
        %v546 = vpop.f32.mrf.mxu0
        %v547 = vadd.f32 %v406, %v546
        %v548 = vpop.f32.mrf.mxu0
        %v549 = vpop.f32.mrf.mxu0
        %v550 = vadd.f32 %v406, %v549
        %v551 = vpop.f32.mrf.mxu0
        %552 = vmatprep.mubr.bf16.mxu0 0
        %553 = vmatmul.mubr.bf16.gmra.mxu0 %v442
        %v554 = vpop.f32.mrf.mxu0
        %v555 = vadd.f32 %v406, %v554
        %v556 = vpop.f32.mrf.mxu0
        %v557 = vpop.f32.mrf.mxu0
        %v558 = vadd.f32 %v406, %v557
        %v559 = vpop.f32.mrf.mxu0
        %560 = vmatprep.mubr.bf16.mxu0 0
        %561 = vmatmul.mubr.bf16.gmra.mxu0 %v443
        %v562 = vpop.f32.mrf.mxu0
        %v563 = vadd.f32 %v406, %v562
        %v564 = vpop.f32.mrf.mxu0
        %v565 = vpop.f32.mrf.mxu0
        %v566 = vadd.f32 %v406, %v565
        %v567 = vpop.f32.mrf.mxu0
        %568 = vmatprep.mubr.bf16.mxu0 0
        %569 = vmatmul.mubr.bf16.gmra.mxu0 %v444
        %v570 = vpop.f32.mrf.mxu0
        %v571 = vadd.f32 %v406, %v570
        %v572 = vpop.f32.mrf.mxu0
        %v573 = vpop.f32.mrf.mxu0
        %v574 = vadd.f32 %v406, %v573
        %v575 = vpop.f32.mrf.mxu0
        %576 = vmatprep.mubr.bf16.mxu0 0
        %577 = vmatmul.mubr.bf16.gmra.mxu0 %v445
        %v578 = vpop.f32.mrf.mxu0
        %v579 = vadd.f32 %v406, %v578
        %v580 = vpop.f32.mrf.mxu0
        %v581 = vpop.f32.mrf.mxu0
        %v582 = vadd.f32 %v406, %v581
        %v583 = vpop.f32.mrf.mxu0
        %584 = vmatprep.mubr.bf16.mxu0 0
        %585 = vmatmul.mubr.bf16.gmra.mxu0 %v446
        %v586 = vpop.f32.mrf.mxu0
        %v587 = vadd.f32 %v406, %v586
        %v588 = vpop.f32.mrf.mxu0
        %v589 = vpop.f32.mrf.mxu0
        %v590 = vadd.f32 %v406, %v589
        %v591 = vpop.f32.mrf.mxu0
        %592 = vmatprep.mubr.bf16.mxu0 0
        %593 = vmatmul.mubr.bf16.gmra.mxu0 %v447
        %v594 = vpop.f32.mrf.mxu0
        %v595 = vadd.f32 %v406, %v594
        %v596 = vpop.f32.mrf.mxu0
        %v597 = vpop.f32.mrf.mxu0
        %v598 = vadd.f32 %v406, %v597
        %v599 = vpop.f32.mrf.mxu0
        %600 = vdwg.mxu0
        %v601 = vmax.f32 %v539, 0.0
        %v602 = vmax.f32 %v542, 0.0
        %v603 = vmax.f32 %v547, 0.0
        %v604 = vmax.f32 %v550, 0.0
        %v605 = vmax.f32 %v555, 0.0
        %v606 = vmax.f32 %v558, 0.0
        %v607 = vmax.f32 %v563, 0.0
        %v608 = vmax.f32 %v566, 0.0
        %v609 = vmax.f32 %v571, 0.0
        %v610 = vmax.f32 %v574, 0.0
        %v611 = vmax.f32 %v579, 0.0
        %v612 = vmax.f32 %v582, 0.0
        %v613 = vmax.f32 %v587, 0.0
        %v614 = vmax.f32 %v590, 0.0
        %v615 = vmax.f32 %v595, 0.0
        %v616 = vmax.f32 %v598, 0.0
        %v617 = vld [vmem:[#allocation2] sm:$0xff]
        %v618 = vld [vmem:[#allocation2 + $0x8] sm:$0xff]
        %v619 = vld [vmem:[#allocation2 + $0x10] sm:$0xff]
        %v620 = vld [vmem:[#allocation2 + $0x18] sm:$0xff]
        %v621 = vld [vmem:[#allocation2 + $0x20] sm:$0xff]
        %v622 = vld [vmem:[#allocation2 + $0x28] sm:$0xff]
        %v623 = vld [vmem:[#allocation2 + $0x30] sm:$0xff]
        %v624 = vld [vmem:[#allocation2 + $0x38] sm:$0xff]
        %v625 = vld [vmem:[#allocation2 + $0x40] sm:$0xff]
        %v626 = vld [vmem:[#allocation2 + $0x48] sm:$0xff]
        %v627 = vld [vmem:[#allocation2 + $0x50] sm:$0xff]
        %v628 = vld [vmem:[#allocation2 + $0x58] sm:$0xff]
        %v629 = vld [vmem:[#allocation2 + $0x60] sm:$0xff]
        %v630 = vld [vmem:[#allocation2 + $0x68] sm:$0xff]
        %v631 = vld [vmem:[#allocation2 + $0x70] sm:$0xff]
        %v632 = vld [vmem:[#allocation2 + $0x78] sm:$0xff]
        %v633 = vpack.c.bf16 %v602, %v601
        %v634 = vpack.c.bf16 %v604, %v603
        %v635 = vpack.c.bf16 %v606, %v605
        %v636 = vpack.c.bf16 %v608, %v607
        %v637 = vpack.c.bf16 %v610, %v609
        %v638 = vpack.c.bf16 %v612, %v611
        %v639 = vpack.c.bf16 %v614, %v613
        %v640 = vpack.c.bf16 %v616, %v615
        %v641 = vld [vmem:[%s302] sm:$0xf]
        %v642 = vld [vmem:[%s302 + $0x4] sm:$0xf]
        %v643 = vld [vmem:[%s302 + $0x8] sm:$0xf]
        %v644 = vld [vmem:[%s302 + $0xc] sm:$0xf]
        %v645 = vld [vmem:[%s302 + $0x10] sm:$0xf]
        %v646 = vld [vmem:[%s302 + $0x14] sm:$0xf]
        %v647 = vld [vmem:[%s302 + $0x18] sm:$0xf]
        %v648 = vld [vmem:[%s302 + $0x1c] sm:$0xf]
        %v649 = vld [vmem:[%s302 + $0x20] sm:$0xf]
        %v650 = vld [vmem:[%s302 + $0x24] sm:$0xf]
        %v651 = vld [vmem:[%s302 + $0x28] sm:$0xf]
        %v652 = vld [vmem:[%s302 + $0x2c] sm:$0xf]
        %v653 = vld [vmem:[%s302 + $0x30] sm:$0xf]
        %v654 = vld [vmem:[%s302 + $0x34] sm:$0xf]
        %v655 = vld [vmem:[%s302 + $0x38] sm:$0xf]
        %v656 = vld [vmem:[%s302 + $0x3c] sm:$0xf]
        %v673 = vunpack.c.l.b16 %v641
        %v674 = vunpack.c.l.b16 %v642
        %v675 = vunpack.c.l.b16 %v643
        %v676 = vunpack.c.l.b16 %v644
        %v677 = vunpack.c.l.b16 %v645
        %v678 = vunpack.c.l.b16 %v646
        %v679 = vunpack.c.l.b16 %v647
        %v680 = vunpack.c.l.b16 %v648
        %v681 = vunpack.c.l.b16 %v649
        %v682 = vunpack.c.l.b16 %v650
        %v683 = vunpack.c.l.b16 %v651
        %v684 = vunpack.c.l.b16 %v652
        %v685 = vunpack.c.l.b16 %v653
        %v686 = vunpack.c.l.b16 %v654
        %v687 = vunpack.c.l.b16 %v655
        %v688 = vunpack.c.l.b16 %v656
        %v689 = vpack.c.b16 %v674, %v673
        %v690 = vpack.c.b16 %v676, %v675
        %v691 = vpack.c.b16 %v678, %v677
        %v692 = vpack.c.b16 %v680, %v679
        %v693 = vpack.c.b16 %v682, %v681
        %v694 = vpack.c.b16 %v684, %v683
        %v695 = vpack.c.b16 %v686, %v685
        %v696 = vpack.c.b16 %v688, %v687
        %705 = vmatprep.subr.bf16.mxu0 0
        %706 = vmatpush1.bf16.msra.mxu0 %v696
        %707 = vmatprep.subr.bf16.mxu0 0
        %708 = vmatpush1.bf16.msra.mxu0 %v695
        %709 = vmatprep.subr.bf16.mxu0 0
        %710 = vmatpush1.bf16.msra.mxu0 %v694
        %711 = vmatprep.subr.bf16.mxu0 0
        %712 = vmatpush1.bf16.msra.mxu0 %v693
        %713 = vmatprep.subr.bf16.mxu0 0
        %714 = vmatpush1.bf16.msra.mxu0 %v692
        %715 = vmatprep.subr.bf16.mxu0 0
        %716 = vmatpush1.bf16.msra.mxu0 %v691
        %717 = vmatprep.subr.bf16.mxu0 0
        %718 = vmatpush1.bf16.msra.mxu0 %v690
        %719 = vmatprep.subr.bf16.mxu0 0
        %720 = vmatpush1.bf16.msra.mxu0 %v689
        %721 = vmatprep.subr.bf16.mxu0 0
        %722 = vmatpush2.bf16.msra.mxu0 0
        %723 = vmatprep.subr.bf16.mxu0 0
        %724 = vmatpush2.bf16.msra.mxu0 0
        %725 = vmatprep.subr.bf16.mxu0 0
        %726 = vmatpush2.bf16.msra.mxu0 0
        %727 = vmatprep.subr.bf16.mxu0 0
        %728 = vmatpush2.bf16.msra.mxu0 0
        %729 = vmatprep.subr.bf16.mxu0 0
        %730 = vmatpush2.bf16.msra.mxu0 0
        %731 = vmatprep.subr.bf16.mxu0 0
        %732 = vmatpush2.bf16.msra.mxu0 0
        %733 = vmatprep.subr.bf16.mxu0 0
        %734 = vmatpush2.bf16.msra.mxu0 0
        %735 = vmatprep.subr.bf16.mxu0 0
        %736 = vmatpush2.bf16.msra.mxu0 0
        %737 = vmatprep.mubr.bf16.mxu0 0
        %738 = vmatmul.mubr.bf16.gmra.mxu0 %v633
        %v739 = vpop.f32.mrf.mxu0
        %v740 = vadd.f32 0.0, %v739
        %v741 = vpop.f32.mrf.mxu0
        %v742 = vpop.f32.mrf.mxu0
        %v743 = vadd.f32 0.0, %v742
        %v744 = vpop.f32.mrf.mxu0
        %745 = vmatprep.mubr.bf16.mxu0 0
        %746 = vmatmul.mubr.bf16.gmra.mxu0 %v634
        %v747 = vpop.f32.mrf.mxu0
        %v748 = vadd.f32 0.0, %v747
        %v749 = vpop.f32.mrf.mxu0
        %v750 = vpop.f32.mrf.mxu0
        %v751 = vadd.f32 0.0, %v750
        %v752 = vpop.f32.mrf.mxu0
        %753 = vmatprep.mubr.bf16.mxu0 0
        %754 = vmatmul.mubr.bf16.gmra.mxu0 %v635
        %v755 = vpop.f32.mrf.mxu0
        %v756 = vadd.f32 0.0, %v755
        %v757 = vpop.f32.mrf.mxu0
        %v758 = vpop.f32.mrf.mxu0
        %v759 = vadd.f32 0.0, %v758
        %v760 = vpop.f32.mrf.mxu0
        %761 = vmatprep.mubr.bf16.mxu0 0
        %762 = vmatmul.mubr.bf16.gmra.mxu0 %v636
        %v763 = vpop.f32.mrf.mxu0
        %v764 = vadd.f32 0.0, %v763
        %v765 = vpop.f32.mrf.mxu0
        %v766 = vpop.f32.mrf.mxu0
        %v767 = vadd.f32 0.0, %v766
        %v768 = vpop.f32.mrf.mxu0
        %769 = vmatprep.mubr.bf16.mxu0 0
        %770 = vmatmul.mubr.bf16.gmra.mxu0 %v637
        %v771 = vpop.f32.mrf.mxu0
        %v772 = vadd.f32 0.0, %v771
        %v773 = vpop.f32.mrf.mxu0
        %v774 = vpop.f32.mrf.mxu0
        %v775 = vadd.f32 0.0, %v774
        %v776 = vpop.f32.mrf.mxu0
        %777 = vmatprep.mubr.bf16.mxu0 0
        %778 = vmatmul.mubr.bf16.gmra.mxu0 %v638
        %v779 = vpop.f32.mrf.mxu0
        %v780 = vadd.f32 0.0, %v779
        %v781 = vpop.f32.mrf.mxu0
        %v782 = vpop.f32.mrf.mxu0
        %v783 = vadd.f32 0.0, %v782
        %v784 = vpop.f32.mrf.mxu0
        %785 = vmatprep.mubr.bf16.mxu0 0
        %786 = vmatmul.mubr.bf16.gmra.mxu0 %v639
        %v787 = vpop.f32.mrf.mxu0
        %v788 = vadd.f32 0.0, %v787
        %v789 = vpop.f32.mrf.mxu0
        %v790 = vpop.f32.mrf.mxu0
        %v791 = vadd.f32 0.0, %v790
        %v792 = vpop.f32.mrf.mxu0
        %793 = vmatprep.mubr.bf16.mxu0 0
        %794 = vmatmul.mubr.bf16.gmra.mxu0 %v640
        %v795 = vpop.f32.mrf.mxu0
        %v796 = vadd.f32 0.0, %v795
        %v797 = vpop.f32.mrf.mxu0
        %v798 = vpop.f32.mrf.mxu0
        %v799 = vadd.f32 0.0, %v798
        %v800 = vpop.f32.mrf.mxu0
        %801 = vdwg.mxu0
        %v802 = vadd.f32 %v617, %v740
        %v803 = vadd.f32 %v618, %v743
        %v804 = vadd.f32 %v619, %v748
        %v805 = vadd.f32 %v620, %v751
        %v806 = vadd.f32 %v621, %v756
        %v807 = vadd.f32 %v622, %v759
        %v808 = vadd.f32 %v623, %v764
        %v809 = vadd.f32 %v624, %v767
        %v810 = vadd.f32 %v625, %v772
        %v811 = vadd.f32 %v626, %v775
        %v812 = vadd.f32 %v627, %v780
        %v813 = vadd.f32 %v628, %v783
        %v814 = vadd.f32 %v629, %v788
        %v815 = vadd.f32 %v630, %v791
        %v816 = vadd.f32 %v631, %v796
        %v817 = vadd.f32 %v632, %v799
        %818 = vst [vmem:[#allocation2] sm:$0xff] %v802
        %819 = vst [vmem:[#allocation2 + $0x8] sm:$0xff] %v803
        %820 = vst [vmem:[#allocation2 + $0x10] sm:$0xff] %v804
        %821 = vst [vmem:[#allocation2 + $0x18] sm:$0xff] %v805
        %822 = vst [vmem:[#allocation2 + $0x20] sm:$0xff] %v806
        %823 = vst [vmem:[#allocation2 + $0x28] sm:$0xff] %v807
        %824 = vst [vmem:[#allocation2 + $0x30] sm:$0xff] %v808
        %825 = vst [vmem:[#allocation2 + $0x38] sm:$0xff] %v809
        %826 = vst [vmem:[#allocation2 + $0x40] sm:$0xff] %v810
        %827 = vst [vmem:[#allocation2 + $0x48] sm:$0xff] %v811
        %828 = vst [vmem:[#allocation2 + $0x50] sm:$0xff] %v812
        %829 = vst [vmem:[#allocation2 + $0x58] sm:$0xff] %v813
        %830 = vst [vmem:[#allocation2 + $0x60] sm:$0xff] %v814
        %831 = vst [vmem:[#allocation2 + $0x68] sm:$0xff] %v815
        %832 = vst [vmem:[#allocation2 + $0x70] sm:$0xff] %v816
        %833 = vst [vmem:[#allocation2 + $0x78] sm:$0xff] %v817
        %p834 = scmp.eq.s32.totalorder %s30, 1
        // Predicated region
        $region57: #{tpu_custom_call.1} parent=39 // pred_check
          %p835 = pneg %p834
        $region58: #{tpu_custom_call.1} parent=39 // pred_check_branch
          %837 = sbr.rel (%p835) target = $region60
        $region59: #{tpu_custom_call.1} parent=39 // pred_region
          %v838 = vld [vmem:[#allocation2] sm:$0xff]
          %v839 = vld [vmem:[#allocation2 + $0x8] sm:$0xff]
          %v840 = vld [vmem:[#allocation2 + $0x10] sm:$0xff]
          %v841 = vld [vmem:[#allocation2 + $0x18] sm:$0xff]
          %v842 = vld [vmem:[#allocation2 + $0x20] sm:$0xff]
          %v843 = vld [vmem:[#allocation2 + $0x28] sm:$0xff]
          %v844 = vld [vmem:[#allocation2 + $0x30] sm:$0xff]
          %v845 = vld [vmem:[#allocation2 + $0x38] sm:$0xff]
          %v846 = vld [vmem:[#allocation2 + $0x40] sm:$0xff]
          %v847 = vld [vmem:[#allocation2 + $0x48] sm:$0xff]
          %v848 = vld [vmem:[#allocation2 + $0x50] sm:$0xff]
          %v849 = vld [vmem:[#allocation2 + $0x58] sm:$0xff]
          %v850 = vld [vmem:[#allocation2 + $0x60] sm:$0xff]
          %v851 = vld [vmem:[#allocation2 + $0x68] sm:$0xff]
          %v852 = vld [vmem:[#allocation2 + $0x70] sm:$0xff]
          %v853 = vld [vmem:[#allocation2 + $0x78] sm:$0xff]
          %v854 = vld [vmem:[%s4] sm:$0x1]
          %v856 = vlaneseq
          %v857 = vshrl.u32 %v856, 7
          %v858 = vsub.s32 0, %v857
          %v859 = vrot.slane %v854, %v858
          %v861 = vadd.f32 %v838, %v859
          %v862 = vadd.f32 %v839, %v859
          %v863 = vadd.f32 %v840, %v859
          %v864 = vadd.f32 %v841, %v859
          %v865 = vadd.f32 %v842, %v859
          %v866 = vadd.f32 %v843, %v859
          %v867 = vadd.f32 %v844, %v859
          %v868 = vadd.f32 %v845, %v859
          %v869 = vadd.f32 %v846, %v859
          %v870 = vadd.f32 %v847, %v859
          %v871 = vadd.f32 %v848, %v859
          %v872 = vadd.f32 %v849, %v859
          %v873 = vadd.f32 %v850, %v859
          %v874 = vadd.f32 %v851, %v859
          %v875 = vadd.f32 %v852, %v859
          %v876 = vadd.f32 %v853, %v859
          %877 = vst [vmem:[%s341] sm:$0xff] %v861
          %878 = vst [vmem:[%s341 + $0x8] sm:$0xff] %v862
          %879 = vst [vmem:[%s341 + $0x10] sm:$0xff] %v863
          %880 = vst [vmem:[%s341 + $0x18] sm:$0xff] %v864
          %881 = vst [vmem:[%s341 + $0x20] sm:$0xff] %v865
          %882 = vst [vmem:[%s341 + $0x28] sm:$0xff] %v866
          %883 = vst [vmem:[%s341 + $0x30] sm:$0xff] %v867
          %884 = vst [vmem:[%s341 + $0x38] sm:$0xff] %v868
          %885 = vst [vmem:[%s341 + $0x40] sm:$0xff] %v869
          %886 = vst [vmem:[%s341 + $0x48] sm:$0xff] %v870
          %887 = vst [vmem:[%s341 + $0x50] sm:$0xff] %v871
          %888 = vst [vmem:[%s341 + $0x58] sm:$0xff] %v872
          %889 = vst [vmem:[%s341 + $0x60] sm:$0xff] %v873
          %890 = vst [vmem:[%s341 + $0x68] sm:$0xff] %v874
          %891 = vst [vmem:[%s341 + $0x70] sm:$0xff] %v875
          %892 = vst [vmem:[%s341 + $0x78] sm:$0xff] %v876
        $region60: #{tpu_custom_call.1} parent=39 // pred_fallthru
          _
        %s893 = sand.u32 %s170, 1
        %s894 = scalar_lea.sflag [#allocation5], %s893
        %s895 = sand.u32 %s170, 1
        %s896 = smul.addr %s895, 128
        %s897 = scalar_lea.vmem [#allocation9], %s896
        // Predicated region
        $region61: #{tpu_custom_call.1} parent=39 // pred_check
          %p898 = pneg %p180
        $region62: #{tpu_custom_call.1} parent=39 // pred_check_branch
          %900 = sbr.rel (%p898) target = $region64
        $region63: #{tpu_custom_call.1} parent=39 // pred_region
          %s901 = smul.u32 16, %s29
          %s903 = ssub.s32 2048, 2048
          %904 = vsyncadd %s894, %s903
          %s905 = smul.addr %s901, 128
          %s906 = scalar_lea.hbm %s5, %s905
          %s907 = sshll.u32 %s897, 4
          %s908 = int_to_ptr.vmem [resolvable:$true] %s907
          %913 = dma.vmem_to_hbm [thread:$0]  %s908, 2048, %s906, %s894, 128, 128, 8
        $region64: #{tpu_custom_call.1} parent=39 // pred_fallthru
          _
      $region40: #{tpu_custom_call.1} parent=5 // pred_fallthru
        _
      %p914 = scmp.le.s32.totalorder 2, %s20
      // Predicated region
      $region65: #{tpu_custom_call.1} parent=5 // pred_check
        %p915 = pneg %p914
      $region66: #{tpu_custom_call.1} parent=5 // pred_check_branch
        %917 = sbr.rel (%p915) target = $region68
      $region67: #{tpu_custom_call.1} parent=5 // pred_region
        %s918 = ssub.s32 %s20, 2
        // Predicated region
        $region69: #{tpu_custom_call.1} parent=67 // pred_check
          %p919 = pneg %p186
        $region70: #{tpu_custom_call.1} parent=67 // pred_check_branch
          %921 = sbr.rel (%p919) target = $region72
        $region71: #{tpu_custom_call.1} parent=67 // pred_region
          %s922 = sand.u32 %s171, 1
          %s923 = scalar_lea.sflag [#allocation5], %s922
          %s924 = sand.u32 %s171, 1
          %s925 = smul.addr %s924, 128
          %s926 = scalar_lea.vmem [#allocation9], %s925
          %927 = dma.done %s923, 2048
        $region72: #{tpu_custom_call.1} parent=67 // pred_fallthru
          _
      $region68: #{tpu_custom_call.1} parent=5 // pred_fallthru
        _
    $region6: #{tpu_custom_call.1} parent=1 // loop_footer
      %s24 = sadd.s32 1, %s20
    $region7: #{tpu_custom_call.1} parent=1 // loop_footer_branch
      %19 = sbr.rel target = $region3
    $region8: #{tpu_custom_call.1} parent=1 // loop_exit
      _
    %928 = vsyncpa [#allocation4], 1
    %s929 = scalar_lea.sflag [#allocation4], 1
    %930 = vsyncpa %s929, 1
    %931 = vsyncpa [#allocation7], 1
    %s932 = scalar_lea.sflag [#allocation7], 1
    %933 = vsyncpa %s932, 1
    %934 = vsyncpa [#allocation5], 1
    %s935 = scalar_lea.sflag [#allocation5], 1
    %936 = vsyncpa %s935, 1

</llo_original>
